<compile_context>
chip_gen: v7x
topology: tpu7x:2x2x1
jax: 0.10.0
libtpu: 0.0.40
codegen_flags: <defaults>
</compile_context>

<pallas_src>
import functools

import jax
import jax.numpy as jnp
from jax.experimental import pallas as pl
from jax.experimental.pallas import tpu as pltpu

LANES = 128
SUBLANES = 8
MAX_BLOCK_ROWS = 4096            # 4096 x 128 x 4B = 2 MiB per f32 input block
VMEM_LIMIT = 32 * 1024 * 1024    # safe on v5e/v6e/v7x, raises v5e's 16 MiB default


def _round_up(x, m):
    return ((x + m - 1) // m) * m


def _bce_with_logits(x, y):
    # numerically-stable binary_cross_entropy_with_logits, reduction='none'
    # BCE = max(x, 0) - x*y + log1p(exp(-|x|))
    return jnp.maximum(x, 0.0) - x * y + jnp.log1p(jnp.exp(-jnp.abs(x)))


def _modulating_factor(one_minus_pt, gamma):
    """(1 - pt)**gamma via repeated multiply for small integer gamma."""
    g = float(gamma)
    if g == int(g) and 0 <= int(g) <= 8:
        gi = int(g)
        if gi == 0:
            return jnp.ones_like(one_minus_pt)
        out = one_minus_pt
        for _ in range(gi - 1):
            out = out * one_minus_pt
        return out
    return jnp.power(one_minus_pt, g)


def _focal_from_logits(x, y, gamma, alpha):
    bce = _bce_with_logits(x, y)
    pt = jnp.exp(-bce)
    return alpha * _modulating_factor(1.0 - pt, gamma) * bce


# ---------------------------------------------------------------------------
# reduce=True (mean) kernel: grid (nsplit, blocks_per_split); output is a
# (nsplit, 8, 128) partial-sum slab that stays resident across the 'arbitrary'
# block axis and is finalized (sum + divide) in the (jitted) wrapper.
# ---------------------------------------------------------------------------
def _focal_mean_kernel(pred_ref, label_ref, out_ref, *, gamma, alpha,
                       n_valid, needs_mask, blocks_per_split):
    c = pl.program_id(0)
    b = pl.program_id(1)

    @pl.when(b == 0)
    def _():
        out_ref[...] = jnp.zeros_like(out_ref)

    x = pred_ref[...].astype(jnp.float32)
    y = label_ref[...].astype(jnp.float32)
    fl = _focal_from_logits(x, y, gamma, alpha)

    def _accumulate(vals):
        # (block_rows, 128) -> sum over leading vreg groups -> (8, 128), VPU only
        partial = jnp.sum(vals.reshape(-1, SUBLANES, LANES), axis=0)
        out_ref[...] += partial.reshape(1, SUBLANES, LANES)

    if needs_mask:
        block_rows, lanes = fl.shape
        block_elems = block_rows * lanes
        start = (c * blocks_per_split + b) * block_elems
        has_pad = start + block_elems > n_valid

        @pl.when(has_pad)
        def _():
            row = jax.lax.broadcasted_iota(jnp.int32, fl.shape, 0)
            col = jax.lax.broadcasted_iota(jnp.int32, fl.shape, 1)
            rem = n_valid - start          # may be <= 0 for out-of-range blocks
            # where-select, not multiply: garbage/pad lanes become exactly 0.0
            _accumulate(jnp.where(row * lanes + col < rem, fl, 0.0))

        @pl.when(jnp.logical_not(has_pad))
        def _():
            _accumulate(fl)
    else:
        _accumulate(fl)


# ---------------------------------------------------------------------------
# reduce=False (elementwise) kernel
# ---------------------------------------------------------------------------
def _focal_elementwise_kernel(pred_ref, label_ref, out_ref, *, gamma, alpha):
    x = pred_ref[...].astype(jnp.float32)
    y = label_ref[...].astype(jnp.float32)
    fl = _focal_from_logits(x, y, gamma, alpha)
    out_ref[...] = fl.astype(out_ref.dtype)


def _to_slab(x, rows):
    """Flatten to a (rows, 128) lane-dense slab; pad only if needed."""
    n = x.size
    flat = jnp.ravel(x)
    pad = rows * LANES - n
    if pad:
        flat = jnp.pad(flat, (0, pad))
    return flat.reshape(rows, LANES)


@functools.partial(jax.jit, static_argnames=("gamma", "alpha", "reduce"))
def _focal_loss(pred, label, *, gamma, alpha, reduce):
    n = pred.size
    # Minimal padding: only to the next 8x128-element boundary.  Ragged last
    # grid blocks are handled in-kernel by masking, never by padding the HBM
    # inputs out to a full block multiple.
    rows = _round_up(pl.cdiv(n, LANES), SUBLANES)
    block_rows = min(rows, MAX_BLOCK_ROWS)
    nblocks = pl.cdiv(rows, block_rows)

    p2d = _to_slab(pred, rows)
    l2d = _to_slab(label, rows)

    if reduce:
        # 2-way parallel split (v7x megacore) only when it divides evenly, so
        # every grid block is at least partially in bounds.
        nsplit = 2 if (nblocks >= 4 and nblocks % 2 == 0) else 1
        blocks_per_split = nblocks // nsplit
        needs_mask = (nblocks * block_rows * LANES != n)

        kernel = functools.partial(
            _focal_mean_kernel, gamma=gamma, alpha=alpha,
            n_valid=n, needs_mask=needs_mask,
            blocks_per_split=blocks_per_split)
        partials = pl.pallas_call(
            kernel,
            out_shape=jax.ShapeDtypeStruct((nsplit, SUBLANES, LANES),
                                           jnp.float32),
            grid_spec=pltpu.PrefetchScalarGridSpec(
                num_scalar_prefetch=0,
                grid=(nsplit, blocks_per_split),
                in_specs=[
                    pl.BlockSpec((block_rows, LANES),
                                 lambda c, b: (c * blocks_per_split + b, 0)),
                    pl.BlockSpec((block_rows, LANES),
                                 lambda c, b: (c * blocks_per_split + b, 0)),
                ],
                out_specs=pl.BlockSpec((1, SUBLANES, LANES),
                                       lambda c, b: (c, 0, 0)),
            ),
            compiler_params=pltpu.CompilerParams(
                dimension_semantics=("parallel", "arbitrary"),
                vmem_limit_bytes=VMEM_LIMIT),
        )(p2d, l2d)
        res = jnp.sum(partials) / jnp.float32(n)
        if jnp.issubdtype(pred.dtype, jnp.floating):
            res = res.astype(pred.dtype)
        return res
    else:
        out_dtype = (pred.dtype
                     if jnp.issubdtype(pred.dtype, jnp.floating)
                     else jnp.float32)
        kernel = functools.partial(
            _focal_elementwise_kernel, gamma=gamma, alpha=alpha)
        out2d = pl.pallas_call(
            kernel,
            out_shape=jax.ShapeDtypeStruct((rows, LANES), out_dtype),
            grid_spec=pltpu.PrefetchScalarGridSpec(
                num_scalar_prefetch=0,
                grid=(nblocks,),
                in_specs=[
                    pl.BlockSpec((block_rows, LANES), lambda i: (i, 0)),
                    pl.BlockSpec((block_rows, LANES), lambda i: (i, 0)),
                ],
                out_specs=pl.BlockSpec((block_rows, LANES), lambda i: (i, 0)),
            ),
            compiler_params=pltpu.CompilerParams(
                dimension_semantics=("parallel",),
                vmem_limit_bytes=VMEM_LIMIT),
        )(p2d, l2d)
        out = out2d.reshape(-1)
        if rows * LANES != n:
            out = out[:n]
        return out.reshape(pred.shape)


class FocalLoss:
    """JAX/Pallas port of the PyTorch FocalLoss module (logits=True path)."""

    def __init__(self, gamma=2, alpha=0.25, logits=True, reduce=None,
                 reduction='mean'):
        self.gamma = float(gamma)
        self.alpha = float(alpha)
        self.logits = logits
        self.reduction = reduction
        if self.reduction == 'mean' and reduce is None:
            self.reduce = True
        elif self.reduction == 'all' and reduce is None:
            self.reduce = False
        elif reduce is not None:
            if isinstance(reduce, bool):
                self.reduce = reduce
            else:
                raise TypeError('Please check the type of args reduce.')
        else:
            raise RuntimeError('Please check all the args in FocalLoss is correct.')
        if not self.logits:
            # TODO(synk): logits=False path (BCE on probabilities) not implemented.
            raise NotImplementedError('logits=False path not implemented')

    def __call__(self, pred, label):
        assert pred.shape == label.shape
        return _focal_loss(pred, label, gamma=self.gamma, alpha=self.alpha,
                           reduce=self.reduce)


def _focal_loss_ref(pred, label, gamma=2.0, alpha=0.25, reduce=True):
    x = pred.astype(jnp.float32)
    y = label.astype(jnp.float32)
    bce = _bce_with_logits(x, y)
    pt = jnp.exp(-bce)
    fl = alpha * (1.0 - pt) ** gamma * bce
    return jnp.mean(fl) if reduce else fl


if __name__ == "__main__":
    key = jax.random.PRNGKey(0)
    k1, k2, k3, k4 = jax.random.split(key, 4)

    # PyTorch-style NCHW input: batch=2, channels=4, spatial=16x16 (logits)
    pred = jax.random.normal(k1, (2, 4, 16, 16), dtype=jnp.float32)
    label = (jax.random.uniform(k2, (2, 4, 16, 16)) > 0.5).astype(jnp.float32)

    loss_mean = FocalLoss(gamma=2, alpha=0.25, logits=True, reduction='mean')
    out = jax.block_until_ready(loss_mean(pred, label))
    ref = _focal_loss_ref(pred, label)
    assert jnp.allclose(out, ref, rtol=1e-5, atol=1e-6), (out, ref)

    # elementwise (reduce=False) path
    loss_all = FocalLoss(gamma=2, alpha=0.25, logits=True, reduction='all')
    out_all = jax.block_until_ready(loss_all(pred, label))
    ref_all = _focal_loss_ref(pred, label, reduce=False)
    assert jnp.allclose(out_all, ref_all, rtol=1e-5, atol=1e-6)

    # ragged size exercises the padding + last-block mask path
    pred_r = jax.random.normal(k3, (3, 5, 7, 9), dtype=jnp.float32)
    label_r = (jax.random.uniform(k4, (3, 5, 7, 9)) > 0.5).astype(jnp.float32)
    out_r = jax.block_until_ready(loss_mean(pred_r, label_r))
    ref_r = _focal_loss_ref(pred_r, label_r)
    assert jnp.allclose(out_r, ref_r, rtol=1e-5, atol=1e-6), (out_r, ref_r)

    print("KERNEL_OK")
</pallas_src>

<mosaic_0001>
module attributes {stable_mosaic.version = 11 : i64} {
  func.func @_focal_mean_kernel(%arg0: i32, %arg1: i32, %arg2: memref<16x128xf32, #tpu.memory_space<vmem>>, %arg3: memref<16x128xf32, #tpu.memory_space<vmem>>, %arg4: memref<1x8x128xf32, #tpu.memory_space<vmem>>) attributes {dimension_semantics = [#tpu.dimension_semantics<parallel>, #tpu.dimension_semantics<arbitrary>], iteration_bounds = array<i64: 1, 1>, scalar_prefetch = 0 : i64, scratch_operands = 0 : i64, tpu.core_type = #tpu.core_type<tc>, window_params = [{transform_indices = @transform_0, window_bounds = array<i64: 16, 128>}, {transform_indices = @transform_1, window_bounds = array<i64: 16, 128>}, {transform_indices = @transform_2, window_bounds = array<i64: 1, 8, 128>}]} {
    %c0_i32 = arith.constant 0 : i32
    %0 = arith.cmpi eq, %arg1, %c0_i32 : i32
    %1 = arith.extui %0 : i1 to i32
    %c0_i32_0 = arith.constant 0 : i32
    %2 = arith.cmpi ne, %1, %c0_i32_0 : i32
    scf.if %2 {
      %cst_15 = arith.constant 0.000000e+00 : f32
      %30 = vector.broadcast %cst_15 : f32 to vector<1x8x128xf32>
      %c0_16 = arith.constant 0 : index
      %c0_17 = arith.constant 0 : index
      %c0_18 = arith.constant 0 : index
      %31 = vector.load %arg4[%c0_16, %c0_17, %c0_18] : memref<1x8x128xf32, #tpu.memory_space<vmem>>, vector<1x8x128xf32>
      tpu.vector_store %arg4[%c0_16, %c0_17, %c0_18], %30 {strides = array<i32>} : memref<1x8x128xf32, #tpu.memory_space<vmem>>, vector<1x8x128xf32>,
    } else {
    }
    %c0 = arith.constant 0 : index
    %c0_1 = arith.constant 0 : index
    %3 = vector.load %arg2[%c0, %c0_1] : memref<16x128xf32, #tpu.memory_space<vmem>>, vector<16x128xf32>
    %c0_2 = arith.constant 0 : index
    %c0_3 = arith.constant 0 : index
    %4 = vector.load %arg3[%c0_2, %c0_3] : memref<16x128xf32, #tpu.memory_space<vmem>>, vector<16x128xf32>
    %cst = arith.constant 0.000000e+00 : f32
    %5 = vector.broadcast %cst : f32 to vector<16x128xf32>
    %6 = arith.maximumf %3, %5 : vector<16x128xf32>
    %7 = arith.mulf %3, %4 : vector<16x128xf32>
    %8 = arith.subf %6, %7 : vector<16x128xf32>
    %9 = math.absf %3 : vector<16x128xf32>
    %cst_4 = arith.constant 0.000000e+00 : f32
    %10 = vector.broadcast %cst_4 : f32 to vector<16x128xf32>
    %11 = arith.subf %10, %9 : vector<16x128xf32>
    %12 = math.exp %11 : vector<16x128xf32>
    %13 = math.log1p %12 : vector<16x128xf32>
    %14 = arith.addf %8, %13 : vector<16x128xf32>
    %cst_5 = arith.constant 0.000000e+00 : f32
    %15 = vector.broadcast %cst_5 : f32 to vector<16x128xf32>
    %16 = arith.subf %15, %14 : vector<16x128xf32>
    %17 = math.exp %16 : vector<16x128xf32>
    %cst_6 = arith.constant 1.000000e+00 : f32
    %18 = vector.broadcast %cst_6 : f32 to vector<16x128xf32>
    %19 = arith.subf %18, %17 : vector<16x128xf32>
    %20 = arith.mulf %19, %19 : vector<16x128xf32>
    %cst_7 = arith.constant 2.500000e-01 : f32
    %21 = vector.broadcast %cst_7 : f32 to vector<16x128xf32>
    %22 = arith.mulf %21, %20 : vector<16x128xf32>
    %23 = arith.mulf %22, %14 : vector<16x128xf32>
    %24 = vector.shape_cast %23 : vector<16x128xf32> to vector<2x8x128xf32>
    %cst_8 = arith.constant dense<0.000000e+00> : vector<8x128xf32>
    %25 = vector.multi_reduction <add>, %24, %cst_8 [0] : vector<2x8x128xf32> to vector<8x128xf32>
    %c0_9 = arith.constant 0 : index
    %c0_10 = arith.constant 0 : index
    %c0_11 = arith.constant 0 : index
    %26 = vector.load %arg4[%c0_9, %c0_10, %c0_11] : memref<1x8x128xf32, #tpu.memory_space<vmem>>, vector<1x8x128xf32>
    %27 = vector.shape_cast %25 : vector<8x128xf32> to vector<1x8x128xf32>
    %28 = arith.addf %26, %27 : vector<1x8x128xf32>
    %c0_12 = arith.constant 0 : index
    %c0_13 = arith.constant 0 : index
    %c0_14 = arith.constant 0 : index
    %29 = vector.load %arg4[%c0_12, %c0_13, %c0_14] : memref<1x8x128xf32, #tpu.memory_space<vmem>>, vector<1x8x128xf32>
    tpu.vector_store %arg4[%c0_12, %c0_13, %c0_14], %28 {strides = array<i32>} : memref<1x8x128xf32, #tpu.memory_space<vmem>>, vector<1x8x128xf32>,
    return
  }
  func.func @transform_0(%arg0: i32, %arg1: i32) -> (i32, i32) {
    %c1_i32 = arith.constant 1 : i32
    %0 = arith.muli %arg0, %c1_i32 : i32
    %1 = arith.addi %0, %arg1 : i32
    %c0_i32 = arith.constant 0 : i32
    %c0_i32_0 = arith.constant 0 : i32
    return %1, %c0_i32 : i32, i32
  }
  func.func @transform_1(%arg0: i32, %arg1: i32) -> (i32, i32) {
    %c1_i32 = arith.constant 1 : i32
    %0 = arith.muli %arg0, %c1_i32 : i32
    %1 = arith.addi %0, %arg1 : i32
    %c0_i32 = arith.constant 0 : i32
    %c0_i32_0 = arith.constant 0 : i32
    return %1, %c0_i32 : i32, i32
  }
  func.func @transform_2(%arg0: i32, %arg1: i32) -> (i32, i32, i32) {
    %c0_i32 = arith.constant 0 : i32
    %c0_i32_0 = arith.constant 0 : i32
    %c0_i32_1 = arith.constant 0 : i32
    return %arg0, %c0_i32, %c0_i32_0 : i32, i32, i32
  }
}

</mosaic_0001>

<llo_original>
// kernel: _focal_loss.1
$region0: #{_focal_loss.1}
  #allocation0 [shape = 'u32[]', space=smem, size = 0x4, offset = 0x4, fixed_abs, tag = 'smem constant byte address 0x4 - core index']
  #allocation1 [shape = 'u32[144,128]{1,0:T(1,128)}', space=vmem, size = 0x12000, scoped, tag = 'internal scratch']
  %s0 = inlined_call_operand.vmem [shape: f32[16,128], index: 0, kind: input, shape index: {}]
  %s1 = inlined_call_operand.vmem [shape: f32[16,128], index: 1, kind: input, shape index: {}]
  %s2 = inlined_call_operand.vmem [shape: f32[1,8,128], index: 2, kind: output, shape index: {}]
  %s3 = sld [smem:[#allocation0]]
  $region22: #{_focal_loss.1} parent=0
    _
  %s5 = ssub.s32 1, %s3
  %s6 = scalar_select 0, %s5, %s3
  // Predicated region
  $region2: #{_focal_loss.1} parent=0 // pred_check
    _
  $region3: #{_focal_loss.1} parent=0 // pred_check_branch
    %8 = sbr.rel (0) target = $region5
  $region4: #{_focal_loss.1} parent=0 // pred_region
    %s9 = sadd.s32 0, 0
    %s10 = smul.u32 2, %s9
    %p11 = scmp.lt.s32.totalorder %s10, 1
    %s12 = scalar_select %p11, %s10, 1
    %s13 = smul.addr %s12, 8
    %s14 = scalar_lea.vmem %s0, %s13
    %s15 = sadd.s32 0, 0
    %s16 = smul.u32 2, %s15
  $region5: #{_focal_loss.1} parent=0 // pred_fallthru
    _
  // Predicated region
  $region6: #{_focal_loss.1} parent=0 // pred_check
    _
  $region7: #{_focal_loss.1} parent=0 // pred_check_branch
    %18 = sbr.rel (0) target = $region9
  $region8: #{_focal_loss.1} parent=0 // pred_region
    %s19 = sadd.s32 0, 0
    %s20 = smul.u32 2, %s19
    %p21 = scmp.lt.s32.totalorder %s20, 1
    %s22 = scalar_select %p21, %s20, 1
    %s23 = smul.addr %s22, 8
    %s24 = scalar_lea.vmem %s1, %s23
    %s25 = sadd.s32 0, 0
    %s26 = smul.u32 2, %s25
  $region9: #{_focal_loss.1} parent=0 // pred_fallthru
    _
  %s27 = sadd.s32 0, 0
  %s28 = smul.u32 2, %s27
  %p29 = scmp.lt.s32.totalorder %s28, 1
  %s30 = scalar_select %p29, %s28, 1
  %s31 = smul.addr %s30, 8
  %s32 = scalar_lea.vmem %s0, %s31
  %s33 = sadd.s32 0, 0
  %s34 = smul.u32 2, %s33
  %p35 = scmp.lt.s32.totalorder %s34, 1
  %s36 = scalar_select %p35, %s34, 1
  %s37 = smul.addr %s36, 8
  %s38 = scalar_lea.vmem %s1, %s37
  %s39 = sadd.s32 0, 0
  %s40 = smul.u32 2, %s39
  %p41 = scmp.lt.s32.totalorder %s40, 1
  %s42 = scalar_select %p41, %s40, 1
  %s43 = smul.addr %s42, 8
  %s44 = scalar_lea.vmem %s0, %s43
  %s45 = sadd.s32 0, 0
  %s46 = smul.u32 2, %s45
  %s47 = sadd.s32 0, 0
  %s48 = smul.u32 2, %s47
  %p49 = scmp.lt.s32.totalorder %s48, 1
  %s50 = scalar_select %p49, %s48, 1
  %s51 = smul.addr %s50, 8
  %s52 = scalar_lea.vmem %s1, %s51
  %s53 = sadd.s32 0, 0
  %s54 = smul.u32 2, %s53
  %p55 = scmp.eq.s32.totalorder 0, 0
  // Predicated region
  $region10: #{_focal_loss.1} parent=0 // pred_check
    %p56 = pneg %p55
  $region11: #{_focal_loss.1} parent=0 // pred_check_branch
    %58 = sbr.rel (%p56) target = $region13
  $region12: #{_focal_loss.1} parent=0 // pred_region
    %59 = vst [vmem:[%s2] sm:$0xff] 0.0
  $region13: #{_focal_loss.1} parent=0 // pred_fallthru
    _
  %v60 = vld [vmem:[%s44] sm:$0xff]
  %v61 = vld [vmem:[%s44 + $0x8] sm:$0xff]
  %v62 = vld [vmem:[%s52] sm:$0xff]
  %v63 = vld [vmem:[%s52 + $0x8] sm:$0xff]
  %v64 = vmax.f32 %v60, 0.0
  %v65 = vmax.f32 %v61, 0.0
  %v66 = vmul.f32 %v60, %v62
  %v67 = vmul.f32 %v61, %v63
  %v68 = vsub.f32 %v64, %v66
  %v69 = vsub.f32 %v65, %v67
  %v70 = vand.u32 2147483647, %v60
  %v71 = vand.u32 2147483647, %v61
  %v72 = vsub.f32 0.0, %v70
  %v73 = vsub.f32 0.0, %v71
  %v74 = vmul.f32 %v72, 1.442695
  %v75 = vpow.pop %v74
  %v76 = vmul.f32 %v73, 1.442695
  %v77 = vpow.pop %v76
  %v78 = vadd.f32 %v75, 1.0
  %v79 = vlog2.pop %v78
  %v80 = vmul.f32 %v79, 0.6931472
  %v81 = vmul.f32 -0.5, %v75
  %v82 = vadd.f32 %v81, 1.0
  %v83 = vmul.f32 %v82, %v75
  %v84 = vand.u32 2147483647, %v75
  %vm85 = vcmp.lt.f32.partialorder %v84, 0.0004427343
  %v86 = vsel %vm85, %v83, %v80
  %v87 = vadd.f32 %v77, 1.0
  %v88 = vlog2.pop %v87
  %v89 = vmul.f32 %v88, 0.6931472
  %v90 = vmul.f32 -0.5, %v77
  %v91 = vadd.f32 %v90, 1.0
  %v92 = vmul.f32 %v91, %v77
  %v93 = vand.u32 2147483647, %v77
  %vm94 = vcmp.lt.f32.partialorder %v93, 0.0004427343
  %v95 = vsel %vm94, %v92, %v89
  %v96 = vadd.f32 %v68, %v86
  %v97 = vadd.f32 %v69, %v95
  %v98 = vsub.f32 0.0, %v96
  %v99 = vsub.f32 0.0, %v97
  %v100 = vmul.f32 %v98, 1.442695
  %v101 = vpow.pop %v100
  %v102 = vmul.f32 %v99, 1.442695
  %v103 = vpow.pop %v102
  %v104 = vsub.f32 1.0, %v101
  %v105 = vsub.f32 1.0, %v103
  %v106 = vmul.f32 %v104, %v104
  %v107 = vmul.f32 %v105, %v105
  %v108 = vmul.f32 %v106, 0.25
  %v109 = vmul.f32 %v107, 0.25
  %v110 = vmul.f32 %v108, %v96
  %v111 = vmul.f32 %v109, %v97
  %v112 = vadd.f32 %v110, %v111
  %v113 = vld [vmem:[%s2] sm:$0xff]
  %v114 = vadd.f32 %v113, %v112
  %115 = vst [vmem:[%s2] sm:$0xff] %v114
  // Predicated region
  $region14: #{_focal_loss.1} parent=0 // pred_check
    _
  $region15: #{_focal_loss.1} parent=0 // pred_check_branch
    %117 = sbr.rel (0) target = $region17
  $region16: #{_focal_loss.1} parent=0 // pred_region
    _
  $region17: #{_focal_loss.1} parent=0 // pred_fallthru
    _
  // Predicated region
  $region18: #{_focal_loss.1} parent=0 // pred_check
    _
  $region19: #{_focal_loss.1} parent=0 // pred_check_branch
    %119 = sbr.rel (0) target = $region21
  $region20: #{_focal_loss.1} parent=0 // pred_region
    _
  $region21: #{_focal_loss.1} parent=0 // pred_fallthru
    _

</llo_original>
